<compile_context>
chip_gen: v6e
topology: v6e:2x2x1
jax: 0.10.0
libtpu: 0.0.40
codegen_flags: <defaults>
</compile_context>

<pallas_src>
import functools

import jax
import jax.numpy as jnp
from jax.experimental import pallas as pl
from jax.experimental.pallas import tpu as pltpu


# ----------------------------------------------------------------------------
# Pallas kernel: max-plus pooling hot path (channels-last)
# ----------------------------------------------------------------------------
def _flat_pool_kernel(h_ref, f_ref, *rest, ks, stride, row_block, w_out,
                      rb_in, halo, use_halo):
    """One grid step: (1 batch) x (c_block channels) x (row_block output rows).

    h_ref    : (ks*ks, c_block)            structuring element, C on lanes
    f_ref    : (1, rb_in, W, c_block)      main input row slab (channels-last)
    halo_ref : (1, halo, W, c_block)       next (ks - stride) input rows [if use_halo]
    o_ref    : (1, row_block, w_out, c_block)
    xbuf     : (rb_in + halo, W, c_block)  VMEM scratch stitching main + halo
    """
    if use_halo:
        halo_ref, o_ref, xbuf = rest
        # Stitch the contiguous input rows this output-row block needs.
        xbuf[pl.ds(0, rb_in), :, :] = f_ref[0]
        xbuf[pl.ds(rb_in, halo), :, :] = halo_ref[0]

        def read_tap(p, q):
            return xbuf[pl.ds(p, row_block, stride),
                        pl.ds(q, w_out, stride), :]
    else:
        (o_ref,) = rest

        def read_tap(p, q):
            return f_ref[0,
                         pl.ds(p, row_block, stride),
                         pl.ds(q, w_out, stride), :]

    acc = None
    for p in range(ks):              # ks*ks is tiny -> static unroll
        for q in range(ks):
            # lane-aligned vector add: h row broadcast over (rows, cols)
            cand = read_tap(p, q) + h_ref[p * ks + q, :][None, None, :]
            acc = cand if acc is None else jnp.maximum(acc, cand)
    o_ref[0] = acc.astype(o_ref.dtype)


# ----------------------------------------------------------------------------
# Wrapper: relayout, tiling choices, pallas_call
# ----------------------------------------------------------------------------
def _divisors(n):
    return [d for d in range(1, n + 1) if n % d == 0]


def parameterized_max_pool2d(f, h, stride, *, compute_dtype=None,
                             vmem_budget_bytes=12 * 1024 * 1024):
    """f: (B, C, H, W); h: (C, ks, ks)  ->  (B, C, H_out, W_out) max-plus pool."""
    B, C, H, W = f.shape
    ks = h.shape[-1]
    h_out = (H - ks) // stride + 1
    w_out = (W - ks) // stride + 1
    out_dtype = f.dtype
    cdt = jnp.dtype(compute_dtype) if compute_dtype is not None else jnp.dtype(f.dtype)
    itemsize = cdt.itemsize

    # ---- channels-last relayout (lane-dense when C is large) -----------------
    # NOTE: in a channels-last pipeline these transposes disappear; they only
    # exist here to preserve the module's NCHW interface.
    x = jnp.transpose(f, (0, 2, 3, 1)).astype(cdt)                   # (B, H, W, C)
    h2 = jnp.transpose(h, (1, 2, 0)).reshape(ks * ks, C).astype(cdt)  # (ks*ks, C)

    # ---- channel tiling -------------------------------------------------------
    if C >= 128:
        c_block = 128
        c_pad = -(-C // 128) * 128
        if c_pad != C:
            x = jnp.pad(x, ((0, 0), (0, 0), (0, 0), (0, c_pad - C)))
            h2 = jnp.pad(h2, ((0, 0), (0, c_pad - C)))
    else:
        c_block, c_pad = C, C
    n_c = c_pad // c_block

    # ---- output-row tiling (halo rows come via a second BlockSpec) ----------
    halo = max(ks - stride, 0)

    def step_bytes(rb, rb_in_, use_halo_):
        main = rb_in_ * W * c_block * itemsize
        hal = (halo if use_halo_ else 0) * W * c_block * itemsize
        out = rb * w_out * c_block * itemsize
        scratch = (rb_in_ + halo) * W * c_block * itemsize if use_halo_ else 0
        return 2 * (main + hal + out) + scratch   # double-buffered in/out + scratch

    if halo > 0:
        cands = [d for d in _divisors(h_out) if (d * stride) % halo == 0]
    else:
        cands = _divisors(h_out)
    if cands:
        fitting = [d for d in cands
                   if step_bytes(d, d * stride, halo > 0) <= vmem_budget_bytes]
        row_block = max(fitting) if fitting else min(cands)
        rb_in = row_block * stride
        use_halo = halo > 0
    else:
        # Halo size does not divide any candidate block: fall back to a single,
        # self-contained row block (no halo spec needed).
        row_block = h_out
        rb_in = (h_out - 1) * stride + ks
        use_halo = False
    n_r = h_out // row_block

    # ---- pallas_call assembly -------------------------------------------------
    kernel = functools.partial(
        _flat_pool_kernel, ks=ks, stride=stride, row_block=row_block,
        w_out=w_out, rb_in=rb_in, halo=halo, use_halo=use_halo)

    in_specs = [
        pl.BlockSpec((ks * ks, c_block), lambda b, c, r: (0, c)),
        pl.BlockSpec((1, rb_in, W, c_block), lambda b, c, r: (b, r, 0, c)),
    ]
    inputs = [h2, x]
    scratch_shapes = []
    if use_halo:
        halo_step = rb_in // halo   # exact by construction of row_block
        in_specs.append(
            pl.BlockSpec((1, halo, W, c_block),
                         lambda b, c, r: (b, (r + 1) * halo_step, 0, c)))
        inputs.append(x)            # same array, different (halo) blocks
        scratch_shapes.append(pltpu.VMEM((rb_in + halo, W, c_block), cdt))

    cost = pl.CostEstimate(
        flops=2 * ks * ks * B * c_pad * h_out * w_out,
        transcendentals=0,
        bytes_accessed=itemsize * B * c_pad * (H * W + h_out * w_out)
        + itemsize * ks * ks * c_pad,
    )

    out_nhwc = pl.pallas_call(
        kernel,
        out_shape=jax.ShapeDtypeStruct((B, h_out, w_out, c_pad), out_dtype),
        grid=(B, n_c, n_r),
        in_specs=in_specs,
        out_specs=pl.BlockSpec((1, row_block, w_out, c_block),
                               lambda b, c, r: (b, r, 0, c)),
        scratch_shapes=scratch_shapes,
        compiler_params=pltpu.CompilerParams(
            dimension_semantics=("parallel", "parallel", "parallel"),
            vmem_limit_bytes=32 * 1024 * 1024,
        ),
        cost_estimate=cost,
    )(*inputs)

    if c_pad != C:
        out_nhwc = out_nhwc[..., :C]
    return jnp.transpose(out_nhwc, (0, 3, 1, 2))


# ----------------------------------------------------------------------------
# Module-equivalent glue (parameter init + structuring-element computation)
# ----------------------------------------------------------------------------
def compute_parabolic_kernel(t, ks, alpha):
    """Matches LearnableFlatPool._compute_parabolic_kernel.

    Note: as in the original module, t == 0 produces NaN/inf; tiny positive t
    saturates off-center taps to -inf, which the max-plus pool handles correctly.
    """
    z_i = jnp.linspace(-ks // 2 + 1, ks // 2, ks, dtype=jnp.float32)
    z_c = z_i[:, None] ** 2 + z_i[None, :] ** 2                 # (ks, ks)
    z = jnp.broadcast_to(z_c[None], (t.shape[0], ks, ks))       # (C, ks, ks)
    return -((z / t[:, None, None]) ** alpha)


def learnable_flat_pool_forward(f, t, *, ks=3, stride=2, alpha=16,
                                compute_dtype=None):
    # compute_dtype=jnp.bfloat16 halves HBM traffic on v6e/v7x (native bf16 VPU);
    # keep the default (f32) on v5e, which has no bf16 VALU.
    h = compute_parabolic_kernel(t, ks, alpha)
    return parameterized_max_pool2d(f, h, stride, compute_dtype=compute_dtype)


# ----------------------------------------------------------------------------
# Pure-JAX reference (same max-plus semantics) for a correctness check
# ----------------------------------------------------------------------------
def _reference_pool(f, h, stride):
    B, C, H, W = f.shape
    ks = h.shape[-1]
    h_out = (H - ks) // stride + 1
    w_out = (W - ks) // stride + 1
    out = jnp.full((B, C, h_out, w_out), -jnp.inf, dtype=f.dtype)
    for p in range(ks):
        for q in range(ks):
            win = f[:, :,
                    p : p + (h_out - 1) * stride + 1 : stride,
                    q : q + (w_out - 1) * stride + 1 : stride]
            out = jnp.maximum(out, win + h[None, :, p : p + 1, q : q + 1])
    return out


if __name__ == "__main__":
    key = jax.random.PRNGKey(0)
    k_x, k_t = jax.random.split(key)

    B, C, H, W = 2, 4, 16, 16
    ks, stride, alpha = 3, 2, 16

    x = jax.random.normal(k_x, (B, C, H, W), dtype=jnp.float32)
    # Parameter t ~ U(0, 4) as in __init__ with init='uniform' (deterministic seed).
    t = jax.random.uniform(k_t, (C,), dtype=jnp.float32, minval=0.0, maxval=4.0)

    out = learnable_flat_pool_forward(x, t, ks=ks, stride=stride, alpha=alpha)
    out = jax.block_until_ready(out)

    # Sanity check against pure-JAX reference.
    h = compute_parabolic_kernel(t, ks, alpha)
    ref = jax.block_until_ready(_reference_pool(x, h, stride))
    assert out.shape == (B, C, (H - ks) // stride + 1, (W - ks) // stride + 1)
    assert jnp.allclose(out, ref, atol=1e-5, rtol=1e-5), "mismatch vs reference"

    print("KERNEL_OK")
</pallas_src>

<mosaic_0001>
module attributes {stable_mosaic.version = 11 : i64} {
  func.func @_flat_pool_kernel(%arg0: i32, %arg1: i32, %arg2: i32, %arg3: memref<9x4xf32, #tpu.memory_space<vmem>>, %arg4: memref<1x14x16x4xf32, #tpu.memory_space<vmem>>, %arg5: memref<1x1x16x4xf32, #tpu.memory_space<vmem>>, %arg6: memref<1x7x7x4xf32, #tpu.memory_space<vmem>>, %arg7: memref<15x16x4xf32, #tpu.memory_space<vmem>>) attributes {dimension_semantics = [#tpu.dimension_semantics<parallel>, #tpu.dimension_semantics<parallel>, #tpu.dimension_semantics<parallel>], iteration_bounds = array<i64: 2, 1, 1>, scalar_prefetch = 0 : i64, scratch_operands = 1 : i64, tpu.core_type = #tpu.core_type<tc>, window_params = [{transform_indices = @transform_0, window_bounds = array<i64: 9, 4>}, {transform_indices = @transform_1, window_bounds = array<i64: 1, 14, 16, 4>}, {transform_indices = @transform_2, window_bounds = array<i64: 1, 1, 16, 4>}, {transform_indices = @transform_3, window_bounds = array<i64: 1, 7, 7, 4>}]} {
    %c0 = arith.constant 0 : index
    %c0_0 = arith.constant 0 : index
    %c0_1 = arith.constant 0 : index
    %c0_2 = arith.constant 0 : index
    %0 = vector.load %arg4[%c0, %c0_0, %c0_1, %c0_2] : memref<1x14x16x4xf32, #tpu.memory_space<vmem>>, vector<1x14x16x4xf32>
    %1 = vector.shape_cast %0 : vector<1x14x16x4xf32> to vector<14x16x4xf32>
    %c0_3 = arith.constant 0 : index
    %c0_4 = arith.constant 0 : index
    %c0_5 = arith.constant 0 : index
    %2 = vector.load %arg7[%c0_3, %c0_4, %c0_5] : memref<15x16x4xf32, #tpu.memory_space<vmem>>, vector<14x16x4xf32>
    tpu.vector_store %arg7[%c0_3, %c0_4, %c0_5], %1 {strides = array<i32>} : memref<15x16x4xf32, #tpu.memory_space<vmem>>, vector<14x16x4xf32>,
    %c0_6 = arith.constant 0 : index
    %c0_7 = arith.constant 0 : index
    %c0_8 = arith.constant 0 : index
    %c0_9 = arith.constant 0 : index
    %3 = vector.load %arg5[%c0_6, %c0_7, %c0_8, %c0_9] : memref<1x1x16x4xf32, #tpu.memory_space<vmem>>, vector<1x1x16x4xf32>
    %4 = vector.shape_cast %3 : vector<1x1x16x4xf32> to vector<1x16x4xf32>
    %c14 = arith.constant 14 : index
    %c0_10 = arith.constant 0 : index
    %c0_11 = arith.constant 0 : index
    %5 = vector.load %arg7[%c14, %c0_10, %c0_11] : memref<15x16x4xf32, #tpu.memory_space<vmem>>, vector<1x16x4xf32>
    tpu.vector_store %arg7[%c14, %c0_10, %c0_11], %4 {strides = array<i32>} : memref<15x16x4xf32, #tpu.memory_space<vmem>>, vector<1x16x4xf32>,
    %c0_12 = arith.constant 0 : index
    %c0_13 = arith.constant 0 : index
    %c0_14 = arith.constant 0 : index
    %6 = tpu.strided_load %arg7[%c0_12, %c0_13, %c0_14] {strides = array<i32: 2, 2, 1>} : memref<15x16x4xf32, #tpu.memory_space<vmem>>, vector<7x7x4xf32>
    %c0_15 = arith.constant 0 : index
    %c0_16 = arith.constant 0 : index
    %7 = vector.load %arg3[%c0_15, %c0_16] : memref<9x4xf32, #tpu.memory_space<vmem>>, vector<1x4xf32>
    %8 = vector.shape_cast %7 : vector<1x4xf32> to vector<4xf32>
    %9 = vector.shape_cast %8 : vector<4xf32> to vector<1x1x4xf32>
    %10 = vector.broadcast %9 : vector<1x1x4xf32> to vector<7x7x4xf32>
    %11 = arith.addf %6, %10 : vector<7x7x4xf32>
    %c0_17 = arith.constant 0 : index
    %c1 = arith.constant 1 : index
    %c0_18 = arith.constant 0 : index
    %12 = tpu.strided_load %arg7[%c0_17, %c1, %c0_18] {strides = array<i32: 2, 2, 1>} : memref<15x16x4xf32, #tpu.memory_space<vmem>>, vector<7x7x4xf32>
    %c1_19 = arith.constant 1 : index
    %c0_20 = arith.constant 0 : index
    %13 = vector.load %arg3[%c1_19, %c0_20] : memref<9x4xf32, #tpu.memory_space<vmem>>, vector<1x4xf32>
    %14 = vector.shape_cast %13 : vector<1x4xf32> to vector<4xf32>
    %15 = vector.shape_cast %14 : vector<4xf32> to vector<1x1x4xf32>
    %16 = vector.broadcast %15 : vector<1x1x4xf32> to vector<7x7x4xf32>
    %17 = arith.addf %12, %16 : vector<7x7x4xf32>
    %18 = arith.maximumf %11, %17 : vector<7x7x4xf32>
    %c0_21 = arith.constant 0 : index
    %c2 = arith.constant 2 : index
    %c0_22 = arith.constant 0 : index
    %19 = tpu.strided_load %arg7[%c0_21, %c2, %c0_22] {strides = array<i32: 2, 2, 1>} : memref<15x16x4xf32, #tpu.memory_space<vmem>>, vector<7x7x4xf32>
    %c2_23 = arith.constant 2 : index
    %c0_24 = arith.constant 0 : index
    %20 = vector.load %arg3[%c2_23, %c0_24] : memref<9x4xf32, #tpu.memory_space<vmem>>, vector<1x4xf32>
    %21 = vector.shape_cast %20 : vector<1x4xf32> to vector<4xf32>
    %22 = vector.shape_cast %21 : vector<4xf32> to vector<1x1x4xf32>
    %23 = vector.broadcast %22 : vector<1x1x4xf32> to vector<7x7x4xf32>
    %24 = arith.addf %19, %23 : vector<7x7x4xf32>
    %25 = arith.maximumf %18, %24 : vector<7x7x4xf32>
    %c1_25 = arith.constant 1 : index
    %c0_26 = arith.constant 0 : index
    %c0_27 = arith.constant 0 : index
    %26 = tpu.strided_load %arg7[%c1_25, %c0_26, %c0_27] {strides = array<i32: 2, 2, 1>} : memref<15x16x4xf32, #tpu.memory_space<vmem>>, vector<7x7x4xf32>
    %c3 = arith.constant 3 : index
    %c0_28 = arith.constant 0 : index
    %27 = vector.load %arg3[%c3, %c0_28] : memref<9x4xf32, #tpu.memory_space<vmem>>, vector<1x4xf32>
    %28 = vector.shape_cast %27 : vector<1x4xf32> to vector<4xf32>
    %29 = vector.shape_cast %28 : vector<4xf32> to vector<1x1x4xf32>
    %30 = vector.broadcast %29 : vector<1x1x4xf32> to vector<7x7x4xf32>
    %31 = arith.addf %26, %30 : vector<7x7x4xf32>
    %32 = arith.maximumf %25, %31 : vector<7x7x4xf32>
    %c1_29 = arith.constant 1 : index
    %c1_30 = arith.constant 1 : index
    %c0_31 = arith.constant 0 : index
    %33 = tpu.strided_load %arg7[%c1_29, %c1_30, %c0_31] {strides = array<i32: 2, 2, 1>} : memref<15x16x4xf32, #tpu.memory_space<vmem>>, vector<7x7x4xf32>
    %c4 = arith.constant 4 : index
    %c0_32 = arith.constant 0 : index
    %34 = vector.load %arg3[%c4, %c0_32] : memref<9x4xf32, #tpu.memory_space<vmem>>, vector<1x4xf32>
    %35 = vector.shape_cast %34 : vector<1x4xf32> to vector<4xf32>
    %36 = vector.shape_cast %35 : vector<4xf32> to vector<1x1x4xf32>
    %37 = vector.broadcast %36 : vector<1x1x4xf32> to vector<7x7x4xf32>
    %38 = arith.addf %33, %37 : vector<7x7x4xf32>
    %39 = arith.maximumf %32, %38 : vector<7x7x4xf32>
    %c1_33 = arith.constant 1 : index
    %c2_34 = arith.constant 2 : index
    %c0_35 = arith.constant 0 : index
    %40 = tpu.strided_load %arg7[%c1_33, %c2_34, %c0_35] {strides = array<i32: 2, 2, 1>} : memref<15x16x4xf32, #tpu.memory_space<vmem>>, vector<7x7x4xf32>
    %c5 = arith.constant 5 : index
    %c0_36 = arith.constant 0 : index
    %41 = vector.load %arg3[%c5, %c0_36] : memref<9x4xf32, #tpu.memory_space<vmem>>, vector<1x4xf32>
    %42 = vector.shape_cast %41 : vector<1x4xf32> to vector<4xf32>
    %43 = vector.shape_cast %42 : vector<4xf32> to vector<1x1x4xf32>
    %44 = vector.broadcast %43 : vector<1x1x4xf32> to vector<7x7x4xf32>
    %45 = arith.addf %40, %44 : vector<7x7x4xf32>
    %46 = arith.maximumf %39, %45 : vector<7x7x4xf32>
    %c2_37 = arith.constant 2 : index
    %c0_38 = arith.constant 0 : index
    %c0_39 = arith.constant 0 : index
    %47 = tpu.strided_load %arg7[%c2_37, %c0_38, %c0_39] {strides = array<i32: 2, 2, 1>} : memref<15x16x4xf32, #tpu.memory_space<vmem>>, vector<7x7x4xf32>
    %c6 = arith.constant 6 : index
    %c0_40 = arith.constant 0 : index
    %48 = vector.load %arg3[%c6, %c0_40] : memref<9x4xf32, #tpu.memory_space<vmem>>, vector<1x4xf32>
    %49 = vector.shape_cast %48 : vector<1x4xf32> to vector<4xf32>
    %50 = vector.shape_cast %49 : vector<4xf32> to vector<1x1x4xf32>
    %51 = vector.broadcast %50 : vector<1x1x4xf32> to vector<7x7x4xf32>
    %52 = arith.addf %47, %51 : vector<7x7x4xf32>
    %53 = arith.maximumf %46, %52 : vector<7x7x4xf32>
    %c2_41 = arith.constant 2 : index
    %c1_42 = arith.constant 1 : index
    %c0_43 = arith.constant 0 : index
    %54 = tpu.strided_load %arg7[%c2_41, %c1_42, %c0_43] {strides = array<i32: 2, 2, 1>} : memref<15x16x4xf32, #tpu.memory_space<vmem>>, vector<7x7x4xf32>
    %c7 = arith.constant 7 : index
    %c0_44 = arith.constant 0 : index
    %55 = vector.load %arg3[%c7, %c0_44] : memref<9x4xf32, #tpu.memory_space<vmem>>, vector<1x4xf32>
    %56 = vector.shape_cast %55 : vector<1x4xf32> to vector<4xf32>
    %57 = vector.shape_cast %56 : vector<4xf32> to vector<1x1x4xf32>
    %58 = vector.broadcast %57 : vector<1x1x4xf32> to vector<7x7x4xf32>
    %59 = arith.addf %54, %58 : vector<7x7x4xf32>
    %60 = arith.maximumf %53, %59 : vector<7x7x4xf32>
    %c2_45 = arith.constant 2 : index
    %c2_46 = arith.constant 2 : index
    %c0_47 = arith.constant 0 : index
    %61 = tpu.strided_load %arg7[%c2_45, %c2_46, %c0_47] {strides = array<i32: 2, 2, 1>} : memref<15x16x4xf32, #tpu.memory_space<vmem>>, vector<7x7x4xf32>
    %c8 = arith.constant 8 : index
    %c0_48 = arith.constant 0 : index
    %62 = vector.load %arg3[%c8, %c0_48] : memref<9x4xf32, #tpu.memory_space<vmem>>, vector<1x4xf32>
    %63 = vector.shape_cast %62 : vector<1x4xf32> to vector<4xf32>
    %64 = vector.shape_cast %63 : vector<4xf32> to vector<1x1x4xf32>
    %65 = vector.broadcast %64 : vector<1x1x4xf32> to vector<7x7x4xf32>
    %66 = arith.addf %61, %65 : vector<7x7x4xf32>
    %67 = arith.maximumf %60, %66 : vector<7x7x4xf32>
    %c0_49 = arith.constant 0 : index
    %c0_50 = arith.constant 0 : index
    %c0_51 = arith.constant 0 : index
    %c0_52 = arith.constant 0 : index
    %68 = vector.load %arg6[%c0_49, %c0_50, %c0_51, %c0_52] : memref<1x7x7x4xf32, #tpu.memory_space<vmem>>, vector<1x7x7x4xf32>
    %69 = vector.shape_cast %68 : vector<1x7x7x4xf32> to vector<7x7x4xf32>
    %70 = vector.shape_cast %67 : vector<7x7x4xf32> to vector<1x7x7x4xf32>
    tpu.vector_store %arg6[%c0_49, %c0_50, %c0_51, %c0_52], %70 {strides = array<i32>} : memref<1x7x7x4xf32, #tpu.memory_space<vmem>>, vector<1x7x7x4xf32>,
    return
  }
  func.func @transform_0(%arg0: i32, %arg1: i32, %arg2: i32) -> (i32, i32) {
    %c0_i32 = arith.constant 0 : i32
    %c0_i32_0 = arith.constant 0 : i32
    return %c0_i32, %arg1 : i32, i32
  }
  func.func @transform_1(%arg0: i32, %arg1: i32, %arg2: i32) -> (i32, i32, i32, i32) {
    %c0_i32 = arith.constant 0 : i32
    %c0_i32_0 = arith.constant 0 : i32
    return %arg0, %arg2, %c0_i32, %arg1 : i32, i32, i32, i32
  }
  func.func @transform_2(%arg0: i32, %arg1: i32, %arg2: i32) -> (i32, i32, i32, i32) {
    %c1_i32 = arith.constant 1 : i32
    %0 = arith.addi %arg2, %c1_i32 : i32
    %c14_i32 = arith.constant 14 : i32
    %1 = arith.muli %0, %c14_i32 : i32
    %c0_i32 = arith.constant 0 : i32
    %c0_i32_0 = arith.constant 0 : i32
    return %arg0, %1, %c0_i32, %arg1 : i32, i32, i32, i32
  }
  func.func @transform_3(%arg0: i32, %arg1: i32, %arg2: i32) -> (i32, i32, i32, i32) {
    %c0_i32 = arith.constant 0 : i32
    %c0_i32_0 = arith.constant 0 : i32
    return %arg0, %arg2, %c0_i32, %arg1 : i32, i32, i32, i32
  }
}

</mosaic_0001>

<llo_original>
// kernel: tpu_custom_call.1
$region0: #{tpu_custom_call.1}
  #allocation0 [shape = 'u32[]', space=smem, size = 0x4, offset = 0x4, fixed_abs, tag = 'smem constant byte address 0x4 - core index']
  #allocation1 [shape = 'u32[144,128]{1,0:T(1,128)}', space=vmem, size = 0x12000, scoped, tag = 'internal scratch']
  #allocation2 [shape = 'f32[15,16,4]{2,1,0:T(8,128)}', space=vmem, size = 0x1e000, scoped, tag = 'scratch operand']
  %s0 = inlined_call_operand.vmem [shape: f32[9,4], index: 0, kind: input, shape index: {}]
  %s1 = inlined_call_operand.vmem [shape: f32[2,16,16,4], index: 1, kind: input, shape index: {}]
  %s2 = inlined_call_operand.vmem [shape: f32[2,16,16,4], index: 2, kind: input, shape index: {}]
  %s3 = inlined_call_operand.vmem [shape: f32[2,7,7,4], index: 3, kind: output, shape index: {}]
  %s4 = sld [smem:[#allocation0]]
  $region45: #{tpu_custom_call.1} parent=0
    _
  %s6 = ssub.s32 1, %s4
  %s7 = scalar_select 0, %s6, %s4
  loop: start=0, step=1, limit=4
  $region2: #{tpu_custom_call.1} parent=0 // loop_pre_header
    _
  $region3: #{tpu_custom_call.1} parent=0 // loop_header
    %s9 = sphi 0, %s13
    %p10 = scmp.ge.s32.totalorder %s9, 4
    %s16 = sphi 0, %s35
    %s17 = sphi 0, %s31
    %s18 = sphi 0, %s27
    %s19 = sphi 0, %s16
    %s20 = sphi 0, %s17
    %s21 = sphi 0, %s18
    %s22 = sphi 0, %s19
    %s23 = sphi 0, %s20
    %s24 = sphi 0, %s21
    %s38 = sphi 0, %s40
    %s41 = sphi 0, %s38
    %s42 = sphi 0, %s41
    %s58 = sphi 0, %s42
    %s68 = sphi 0, %s70
    %s71 = sphi 0, %s68
    %s72 = sphi 0, %s71
    %s88 = sphi 0, %s72
    %s102 = sphi 0, %s104
    %s105 = sphi 0, %s102
    %s106 = sphi 0, %s105
    %s122 = sphi 0, %s106
    %s132 = sphi 0, %s134
    %s135 = sphi 0, %s132
    %s136 = sphi 0, %s135
    %s152 = sphi 0, %s136
  $region4: #{tpu_custom_call.1} parent=0 // loop_header_branch
    %12 = sbr.rel (%p10) target = $region8
  $region5: #{tpu_custom_call.1} parent=0 // loop_body
    %s14 = ssub.s32 %s9, 1
    %s15 = ssub.s32 %s9, 2
    %s25 = sadd.s32 1, %s18
    %p26 = scmp.ge.s32.totalorder %s25, 1
    %s27 = scalar_select %p26, 0, %s25
    %s28 = sadd.s32 1, %s17
    %s29 = scalar_select %p26, %s28, %s17
    %p30 = scmp.ge.s32.totalorder %s29, 1
    %s31 = scalar_select %p30, 0, %s29
    %s32 = sadd.s32 1, %s16
    %s33 = scalar_select %p30, %s32, %s16
    %p34 = scmp.ge.s32.totalorder %s33, 2
    %s35 = scalar_select %p34, 0, %s33
    %s36 = ssub.s32 %s17, %s31
    %p37 = scmp.eq.s32.totalorder %s36, 0
    %s39 = sadd.s32 %s38, 1
    %s40 = scalar_select %p37, %s38, %s39
    %p43 = pneg %p37
    %p44 = scmp.eq.s32.totalorder %s9, 1
    %p45 = por %p43, %p44
    %p46 = scmp.ne.s32.totalorder %s38, %s41
    %p47 = scmp.eq.s32.totalorder %s9, 0
    %p48 = por %p46, %p47
    %p49 = scmp.ne.s32.totalorder %s38, %s41
    %p50 = scmp.eq.s32.totalorder %s14, 1
    %p51 = por %p49, %p50
    %p52 = scmp.ne.s32.totalorder %s41, %s42
    %p53 = scmp.eq.s32.totalorder %s14, 0
    %p54 = por %p52, %p53
    %p55 = scmp.ne.s32.totalorder %s41, %s42
    %p56 = scmp.eq.s32.totalorder %s15, 1
    %p57 = por %p55, %p56
    %p59 = scmp.ne.s32.totalorder %s42, %s58
    %p60 = scmp.eq.s32.totalorder %s15, 0
    %p61 = por %p59, %p60
    %s62 = ssub.s32 %s16, %s35
    %s63 = ssub.s32 %s18, %s27
    %s64 = sor.u32 %s62, %s63
    %s65 = ssub.s32 %s17, %s31
    %s66 = sor.u32 %s64, %s65
    %p67 = scmp.eq.s32.totalorder %s66, 0
    %s69 = sadd.s32 %s68, 1
    %s70 = scalar_select %p67, %s68, %s69
    %p73 = pneg %p67
    %p74 = scmp.eq.s32.totalorder %s9, 1
    %p75 = por %p73, %p74
    %p76 = scmp.ne.s32.totalorder %s68, %s71
    %p77 = scmp.eq.s32.totalorder %s9, 0
    %p78 = por %p76, %p77
    %p79 = scmp.ne.s32.totalorder %s68, %s71
    %p80 = scmp.eq.s32.totalorder %s14, 1
    %p81 = por %p79, %p80
    %p82 = scmp.ne.s32.totalorder %s71, %s72
    %p83 = scmp.eq.s32.totalorder %s14, 0
    %p84 = por %p82, %p83
    %p85 = scmp.ne.s32.totalorder %s71, %s72
    %p86 = scmp.eq.s32.totalorder %s15, 1
    %p87 = por %p85, %p86
    %p89 = scmp.ne.s32.totalorder %s72, %s88
    %p90 = scmp.eq.s32.totalorder %s15, 0
    %p91 = por %p89, %p90
    %s92 = sadd.s32 %s18, 1
    %s93 = smul.u32 %s92, 14
    %s94 = sadd.s32 %s27, 1
    %s95 = smul.u32 %s94, 14
    %s96 = ssub.s32 %s16, %s35
    %s97 = ssub.s32 %s93, %s95
    %s98 = sor.u32 %s96, %s97
    %s99 = ssub.s32 %s17, %s31
    %s100 = sor.u32 %s98, %s99
    %p101 = scmp.eq.s32.totalorder %s100, 0
    %s103 = sadd.s32 %s102, 1
    %s104 = scalar_select %p101, %s102, %s103
    %p107 = pneg %p101
    %p108 = scmp.eq.s32.totalorder %s9, 1
    %p109 = por %p107, %p108
    %p110 = scmp.ne.s32.totalorder %s102, %s105
    %p111 = scmp.eq.s32.totalorder %s9, 0
    %p112 = por %p110, %p111
    %p113 = scmp.ne.s32.totalorder %s102, %s105
    %p114 = scmp.eq.s32.totalorder %s14, 1
    %p115 = por %p113, %p114
    %p116 = scmp.ne.s32.totalorder %s105, %s106
    %p117 = scmp.eq.s32.totalorder %s14, 0
    %p118 = por %p116, %p117
    %p119 = scmp.ne.s32.totalorder %s105, %s106
    %p120 = scmp.eq.s32.totalorder %s15, 1
    %p121 = por %p119, %p120
    %p123 = scmp.ne.s32.totalorder %s106, %s122
    %p124 = scmp.eq.s32.totalorder %s15, 0
    %p125 = por %p123, %p124
    %s126 = ssub.s32 %s16, %s35
    %s127 = ssub.s32 %s18, %s27
    %s128 = sor.u32 %s126, %s127
    %s129 = ssub.s32 %s17, %s31
    %s130 = sor.u32 %s128, %s129
    %p131 = scmp.eq.s32.totalorder %s130, 0
    %s133 = sadd.s32 %s132, 1
    %s134 = scalar_select %p131, %s132, %s133
    %p137 = pneg %p131
    %p138 = scmp.eq.s32.totalorder %s9, 1
    %p139 = por %p137, %p138
    %p140 = scmp.ne.s32.totalorder %s132, %s135
    %p141 = scmp.eq.s32.totalorder %s9, 0
    %p142 = por %p140, %p141
    %p143 = scmp.ne.s32.totalorder %s132, %s135
    %p144 = scmp.eq.s32.totalorder %s14, 1
    %p145 = por %p143, %p144
    %p146 = scmp.ne.s32.totalorder %s135, %s136
    %p147 = scmp.eq.s32.totalorder %s14, 0
    %p148 = por %p146, %p147
    %p149 = scmp.ne.s32.totalorder %s135, %s136
    %p150 = scmp.eq.s32.totalorder %s15, 1
    %p151 = por %p149, %p150
    %p153 = scmp.ne.s32.totalorder %s136, %s152
    %p154 = scmp.eq.s32.totalorder %s15, 0
    %p155 = por %p153, %p154
    %p156 = scmp.le.s32.totalorder 1, %s9
    %p157 = scmp.lt.s32.totalorder %s9, 3
    %p158 = pnand %p156, %p157
    %p159 = pneg %p158
    // Predicated region
    $region9: #{tpu_custom_call.1} parent=5 // pred_check
      _
    $region10: #{tpu_custom_call.1} parent=5 // pred_check_branch
      %161 = sbr.rel (%p158) target = $region12
    $region11: #{tpu_custom_call.1} parent=5 // pred_region
      %s162 = ssub.s32 %s9, 1
      // Predicated region
      $region13: #{tpu_custom_call.1} parent=11 // pred_check
        %p163 = pneg %p54
      $region14: #{tpu_custom_call.1} parent=11 // pred_check_branch
        %165 = sbr.rel (%p163) target = $region16
      $region15: #{tpu_custom_call.1} parent=11 // pred_region
        %p166 = scmp.lt.s32.totalorder %s20, 0
        %s167 = scalar_select %p166, %s20, 0
        %s168 = smul.addr %s167, 8
        %s169 = scalar_lea.vmem %s0, %s168
      $region16: #{tpu_custom_call.1} parent=11 // pred_fallthru
        _
    $region12: #{tpu_custom_call.1} parent=5 // pred_fallthru
      _
    %p170 = scmp.lt.s32.totalorder %s9, 2
    // Predicated region
    $region17: #{tpu_custom_call.1} parent=5 // pred_check
      %p171 = pneg %p170
    $region18: #{tpu_custom_call.1} parent=5 // pred_check_branch
      %173 = sbr.rel (%p171) target = $region20
    $region19: #{tpu_custom_call.1} parent=5 // pred_region
      // Predicated region
      $region21: #{tpu_custom_call.1} parent=19 // pred_check
        %p174 = pneg %p78
      $region22: #{tpu_custom_call.1} parent=19 // pred_check_branch
        %176 = sbr.rel (%p174) target = $region24
      $region23: #{tpu_custom_call.1} parent=19 // pred_region
        %s177 = smul.u32 14, %s18
        %s178 = ssub.s32 16, %s177
        %p179 = scmp.lt.s32.totalorder %s178, 14
        %s180 = scalar_select %p179, %s178, 14
        %s181 = smul.u32 128, %s180
        %s182 = smul.u32 %s181, 2
        %p183 = scmp.lt.s32.totalorder %s16, 1
        %s184 = scalar_select %p183, %s16, 1
        %p185 = scmp.lt.s32.totalorder %s177, 15
        %s186 = scalar_select %p185, %s177, 15
        %p187 = scmp.lt.s32.totalorder %s17, 0
        %s188 = scalar_select %p187, %s17, 0
        %s189 = smul.addr %s186, 2
        %s190 = sadd.s32 %s188, %s189
        %s191 = smul.addr %s184, 32
        %s192 = sadd.s32 %s190, %s191
        %s193 = smul.addr %s192, 8
        %s194 = scalar_lea.vmem %s1, %s193
        %s195 = smul.u32 14, %s18
        %s196 = ssub.s32 16, %s195
        %p197 = scmp.lt.s32.totalorder %s196, 14
        %s198 = scalar_select %p197, %s196, 14
        %s199 = smul.u32 128, %s198
        %s200 = smul.u32 %s199, 2
      $region24: #{tpu_custom_call.1} parent=19 // pred_fallthru
        _
      // Predicated region
      $region25: #{tpu_custom_call.1} parent=19 // pred_check
        %p201 = pneg %p112
      $region26: #{tpu_custom_call.1} parent=19 // pred_check_branch
        %203 = sbr.rel (%p201) target = $region28
      $region27: #{tpu_custom_call.1} parent=19 // pred_region
        %s204 = sadd.s32 %s18, 1
        %s205 = smul.u32 %s204, 14
        %p206 = scmp.lt.s32.totalorder %s16, 1
        %s207 = scalar_select %p206, %s16, 1
        %p208 = scmp.lt.s32.totalorder %s205, 15
        %s209 = scalar_select %p208, %s205, 15
        %p210 = scmp.lt.s32.totalorder %s17, 0
        %s211 = scalar_select %p210, %s17, 0
        %s212 = smul.addr %s209, 2
        %s213 = sadd.s32 %s211, %s212
        %s214 = smul.addr %s207, 32
        %s215 = sadd.s32 %s213, %s214
        %s216 = smul.addr %s215, 8
        %s217 = scalar_lea.vmem %s2, %s216
        %s218 = sadd.s32 %s18, 1
        %s219 = smul.u32 %s218, 14
      $region28: #{tpu_custom_call.1} parent=19 // pred_fallthru
        _
    $region20: #{tpu_custom_call.1} parent=5 // pred_fallthru
      _
    %p220 = scmp.le.s32.totalorder 1, %s9
    %p221 = scmp.lt.s32.totalorder %s9, 3
    %p222 = pnand %p220, %p221
    %p223 = pneg %p222
    // Predicated region
    $region29: #{tpu_custom_call.1} parent=5 // pred_check
      _
    $region30: #{tpu_custom_call.1} parent=5 // pred_check_branch
      %225 = sbr.rel (%p222) target = $region32
    $region31: #{tpu_custom_call.1} parent=5 // pred_region
      %s226 = ssub.s32 %s9, 1
      %p227 = scmp.lt.s32.totalorder %s20, 0
      %s228 = scalar_select %p227, %s20, 0
      %s229 = smul.addr %s228, 8
      %s230 = scalar_lea.vmem %s0, %s229
      %p231 = pneg %p54
      %p232 = pneg %p51
      %s233 = smul.u32 14, %s21
      %s234 = ssub.s32 16, %s233
      %p235 = scmp.lt.s32.totalorder %s234, 14
      %s236 = scalar_select %p235, %s234, 14
      %s237 = smul.u32 128, %s236
      %s238 = smul.u32 %s237, 2
      %p239 = scmp.lt.s32.totalorder %s19, 1
      %s240 = scalar_select %p239, %s19, 1
      %p241 = scmp.lt.s32.totalorder %s233, 15
      %s242 = scalar_select %p241, %s233, 15
      %p243 = scmp.lt.s32.totalorder %s20, 0
      %s244 = scalar_select %p243, %s20, 0
      %s245 = smul.addr %s242, 2
      %s246 = sadd.s32 %s244, %s245
      %s247 = smul.addr %s240, 32
      %s248 = sadd.s32 %s246, %s247
      %s249 = smul.addr %s248, 8
      %s250 = scalar_lea.vmem %s1, %s249
      %p251 = pneg %p84
      %p252 = pneg %p81
      %s253 = sadd.s32 %s21, 1
      %s254 = smul.u32 %s253, 14
      %p255 = scmp.lt.s32.totalorder %s19, 1
      %s256 = scalar_select %p255, %s19, 1
      %p257 = scmp.lt.s32.totalorder %s254, 15
      %s258 = scalar_select %p257, %s254, 15
      %p259 = scmp.lt.s32.totalorder %s20, 0
      %s260 = scalar_select %p259, %s20, 0
      %s261 = smul.addr %s258, 2
      %s262 = sadd.s32 %s260, %s261
      %s263 = smul.addr %s256, 32
      %s264 = sadd.s32 %s262, %s263
      %s265 = smul.addr %s264, 8
      %s266 = scalar_lea.vmem %s2, %s265
      %p267 = pneg %p118
      %p268 = pneg %p115
      %p269 = pneg %p148
      %p270 = pneg %p145
      %s271 = smul.u32 7, %s21
      %p272 = scmp.lt.s32.totalorder %s19, 1
      %s273 = scalar_select %p272, %s19, 1
      %p274 = scmp.lt.s32.totalorder %s271, 6
      %s275 = scalar_select %p274, %s271, 6
      %p276 = scmp.lt.s32.totalorder %s20, 0
      %s277 = scalar_select %p276, %s20, 0
      %s278 = sadd.s32 %s277, %s275
      %s279 = smul.addr %s273, 7
      %s280 = sadd.s32 %s278, %s279
      %s281 = smul.addr %s280, 8
      %s282 = scalar_lea.vmem %s3, %s281
      %p283 = scmp.lt.s32.totalorder %s20, 0
      %s284 = scalar_select %p283, %s20, 0
      %s285 = smul.addr %s284, 8
      %s286 = scalar_lea.vmem %s0, %s285
      %s287 = smul.u32 14, %s21
      %s288 = ssub.s32 16, %s287
      %p289 = scmp.lt.s32.totalorder %s288, 14
      %s290 = scalar_select %p289, %s288, 14
      %s291 = smul.u32 128, %s290
      %s292 = smul.u32 %s291, 2
      %p293 = scmp.lt.s32.totalorder %s19, 1
      %s294 = scalar_select %p293, %s19, 1
      %p295 = scmp.lt.s32.totalorder %s287, 15
      %s296 = scalar_select %p295, %s287, 15
      %p297 = scmp.lt.s32.totalorder %s20, 0
      %s298 = scalar_select %p297, %s20, 0
      %s299 = smul.addr %s296, 2
      %s300 = sadd.s32 %s298, %s299
      %s301 = smul.addr %s294, 32
      %s302 = sadd.s32 %s300, %s301
      %s303 = smul.addr %s302, 8
      %s304 = scalar_lea.vmem %s1, %s303
      %s305 = smul.u32 14, %s21
      %s306 = ssub.s32 16, %s305
      %p307 = scmp.lt.s32.totalorder %s306, 14
      %s308 = scalar_select %p307, %s306, 14
      %s309 = smul.u32 128, %s308
      %s310 = smul.u32 %s309, 2
      %s311 = sadd.s32 %s21, 1
      %s312 = smul.u32 %s311, 14
      %p313 = scmp.lt.s32.totalorder %s19, 1
      %s314 = scalar_select %p313, %s19, 1
      %p315 = scmp.lt.s32.totalorder %s312, 15
      %s316 = scalar_select %p315, %s312, 15
      %p317 = scmp.lt.s32.totalorder %s20, 0
      %s318 = scalar_select %p317, %s20, 0
      %s319 = smul.addr %s316, 2
      %s320 = sadd.s32 %s318, %s319
      %s321 = smul.addr %s314, 32
      %s322 = sadd.s32 %s320, %s321
      %s323 = smul.addr %s322, 8
      %s324 = scalar_lea.vmem %s2, %s323
      %s325 = sadd.s32 %s21, 1
      %s326 = smul.u32 %s325, 14
      %s327 = smul.u32 7, %s21
      %p328 = scmp.lt.s32.totalorder %s19, 1
      %s329 = scalar_select %p328, %s19, 1
      %p330 = scmp.lt.s32.totalorder %s327, 6
      %s331 = scalar_select %p330, %s327, 6
      %p332 = scmp.lt.s32.totalorder %s20, 0
      %s333 = scalar_select %p332, %s20, 0
      %s334 = sadd.s32 %s333, %s331
      %s335 = smul.addr %s329, 7
      %s336 = sadd.s32 %s334, %s335
      %s337 = smul.addr %s336, 8
      %s338 = scalar_lea.vmem %s3, %s337
      %s339 = smul.u32 7, %s21
      %v340 = vld [vmem:[%s304] sm:$0xff]
      %v341 = vld [vmem:[%s304 + $0x8] sm:$0xff]
      %v342 = vld [vmem:[%s304 + $0x10] sm:$0xff]
      %v343 = vld [vmem:[%s304 + $0x18] sm:$0xff]
      %v344 = vld [vmem:[%s304 + $0x20] sm:$0xff]
      %v345 = vld [vmem:[%s304 + $0x28] sm:$0xff]
      %v346 = vld [vmem:[%s304 + $0x30] sm:$0xff]
      %v347 = vld [vmem:[%s304 + $0x38] sm:$0xff]
      %v348 = vld [vmem:[%s304 + $0x40] sm:$0xff]
      %v349 = vld [vmem:[%s304 + $0x48] sm:$0xff]
      %v350 = vld [vmem:[%s304 + $0x50] sm:$0xff]
      %v351 = vld [vmem:[%s304 + $0x58] sm:$0xff]
      %v352 = vld [vmem:[%s304 + $0x60] sm:$0xff]
      %v353 = vld [vmem:[%s304 + $0x68] sm:$0xff]
      %v354 = vld [vmem:[%s304 + $0x70] sm:$0xff]
      %v355 = vld [vmem:[%s304 + $0x78] sm:$0xff]
      %v356 = vld [vmem:[%s304 + $0x80] sm:$0xff]
      %v357 = vld [vmem:[%s304 + $0x88] sm:$0xff]
      %v358 = vld [vmem:[%s304 + $0x90] sm:$0xff]
      %v359 = vld [vmem:[%s304 + $0x98] sm:$0xff]
      %v360 = vld [vmem:[%s304 + $0xa0] sm:$0xff]
      %v361 = vld [vmem:[%s304 + $0xa8] sm:$0xff]
      %v362 = vld [vmem:[%s304 + $0xb0] sm:$0xff]
      %v363 = vld [vmem:[%s304 + $0xb8] sm:$0xff]
      %v364 = vld [vmem:[%s304 + $0xc0] sm:$0xff]
      %v365 = vld [vmem:[%s304 + $0xc8] sm:$0xff]
      %v366 = vld [vmem:[%s304 + $0xd0] sm:$0xff]
      %v367 = vld [vmem:[%s304 + $0xd8] sm:$0xff]
      %vm368 = vcmask 31744
      %369 = vst.msk [vmem:[#allocation2] sm:$0xff] %vm368, %v340
      %370 = vst.msk [vmem:[#allocation2 + $0x8] sm:$0xff] %vm368, %v341
      %371 = vst.msk [vmem:[#allocation2 + $0x10] sm:$0xff] %vm368, %v342
      %372 = vst.msk [vmem:[#allocation2 + $0x18] sm:$0xff] %vm368, %v343
      %373 = vst.msk [vmem:[#allocation2 + $0x20] sm:$0xff] %vm368, %v344
      %374 = vst.msk [vmem:[#allocation2 + $0x28] sm:$0xff] %vm368, %v345
      %375 = vst.msk [vmem:[#allocation2 + $0x30] sm:$0xff] %vm368, %v346
      %376 = vst.msk [vmem:[#allocation2 + $0x38] sm:$0xff] %vm368, %v347
      %377 = vst.msk [vmem:[#allocation2 + $0x40] sm:$0xff] %vm368, %v348
      %378 = vst.msk [vmem:[#allocation2 + $0x48] sm:$0xff] %vm368, %v349
      %379 = vst.msk [vmem:[#allocation2 + $0x50] sm:$0xff] %vm368, %v350
      %380 = vst.msk [vmem:[#allocation2 + $0x58] sm:$0xff] %vm368, %v351
      %381 = vst.msk [vmem:[#allocation2 + $0x60] sm:$0xff] %vm368, %v352
      %382 = vst.msk [vmem:[#allocation2 + $0x68] sm:$0xff] %vm368, %v353
      %383 = vst.msk [vmem:[#allocation2 + $0x70] sm:$0xff] %vm368, %v354
      %384 = vst.msk [vmem:[#allocation2 + $0x78] sm:$0xff] %vm368, %v355
      %385 = vst.msk [vmem:[#allocation2 + $0x80] sm:$0xff] %vm368, %v356
      %386 = vst.msk [vmem:[#allocation2 + $0x88] sm:$0xff] %vm368, %v357
      %387 = vst.msk [vmem:[#allocation2 + $0x90] sm:$0xff] %vm368, %v358
      %388 = vst.msk [vmem:[#allocation2 + $0x98] sm:$0xff] %vm368, %v359
      %389 = vst.msk [vmem:[#allocation2 + $0xa0] sm:$0xff] %vm368, %v360
      %390 = vst.msk [vmem:[#allocation2 + $0xa8] sm:$0xff] %vm368, %v361
      %391 = vst.msk [vmem:[#allocation2 + $0xb0] sm:$0xff] %vm368, %v362
      %392 = vst.msk [vmem:[#allocation2 + $0xb8] sm:$0xff] %vm368, %v363
      %393 = vst.msk [vmem:[#allocation2 + $0xc0] sm:$0xff] %vm368, %v364
      %394 = vst.msk [vmem:[#allocation2 + $0xc8] sm:$0xff] %vm368, %v365
      %395 = vst.msk [vmem:[#allocation2 + $0xd0] sm:$0xff] %vm368, %v366
      %396 = vst.msk [vmem:[#allocation2 + $0xd8] sm:$0xff] %vm368, %v367
      %v397 = vld [vmem:[%s324] sm:$0xff]
      %v398 = vld [vmem:[%s324 + $0x8] sm:$0xff]
      %s399 = scalar_lea.vmem [#allocation2], 224
      %400 = vst.msk [vmem:[%s399] sm:$0xff] %vm368, %v397
      %401 = vst.msk [vmem:[%s399 + $0x8] sm:$0xff] %vm368, %v398
      %v402 = vld [vmem:[#allocation2] ss:$2 sm:$0x7f]
      %s403 = scalar_lea.vmem [#allocation2], 32
      %v404 = vld [vmem:[%s403] ss:$2 sm:$0x7f]
      %s405 = scalar_lea.vmem [#allocation2], 64
      %v406 = vld [vmem:[%s405] ss:$2 sm:$0x7f]
      %s407 = scalar_lea.vmem [#allocation2], 96
      %v408 = vld [vmem:[%s407] ss:$2 sm:$0x7f]
      %s409 = scalar_lea.vmem [#allocation2], 128
      %v410 = vld [vmem:[%s409] ss:$2 sm:$0x7f]
      %s411 = scalar_lea.vmem [#allocation2], 160
      %v412 = vld [vmem:[%s411] ss:$2 sm:$0x7f]
      %s413 = scalar_lea.vmem [#allocation2], 192
      %v414 = vld [vmem:[%s413] ss:$2 sm:$0x7f]
      %v415 = vld [vmem:[%s286] sm:$0x1]
      %v416 = vlaneseq
      %v417 = vshrl.u32 %v416, 7
      %v418 = vsub.s32 0, %v417
      %v419 = vrot.slane %v415, %v418
      %v420 = vadd.f32 %v402, %v419
      %v421 = vadd.f32 %v404, %v419
      %v422 = vadd.f32 %v406, %v419
      %v423 = vadd.f32 %v408, %v419
      %v424 = vadd.f32 %v410, %v419
      %v425 = vadd.f32 %v412, %v419
      %v426 = vadd.f32 %v414, %v419
      %s427 = scalar_lea.vmem [#allocation2], 1
      %v428 = vld [vmem:[%s427] ss:$2 sm:$0x7f]
      %s429 = scalar_lea.vmem [#allocation2], 33
      %v430 = vld [vmem:[%s429] ss:$2 sm:$0x7f]
      %s431 = scalar_lea.vmem [#allocation2], 65
      %v432 = vld [vmem:[%s431] ss:$2 sm:$0x7f]
      %s433 = scalar_lea.vmem [#allocation2], 97
      %v434 = vld [vmem:[%s433] ss:$2 sm:$0x7f]
      %s435 = scalar_lea.vmem [#allocation2], 129
      %v436 = vld [vmem:[%s435] ss:$2 sm:$0x7f]
      %s437 = scalar_lea.vmem [#allocation2], 161
      %v438 = vld [vmem:[%s437] ss:$2 sm:$0x7f]
      %s439 = scalar_lea.vmem [#allocation2], 193
      %v440 = vld [vmem:[%s439] ss:$2 sm:$0x7f]
      %v441 = vld [vmem:[%s286 + $0x1] sm:$0x1]
      %v442 = vlaneseq
      %v443 = vshrl.u32 %v442, 7
      %v444 = vsub.s32 0, %v443
      %v445 = vrot.slane %v441, %v444
      %v446 = vadd.f32 %v428, %v445
      %v447 = vadd.f32 %v430, %v445
      %v448 = vadd.f32 %v432, %v445
      %v449 = vadd.f32 %v434, %v445
      %v450 = vadd.f32 %v436, %v445
      %v451 = vadd.f32 %v438, %v445
      %v452 = vadd.f32 %v440, %v445
      %v453 = vmax.f32 %v420, %v446
      %v454 = vmax.f32 %v421, %v447
      %v455 = vmax.f32 %v422, %v448
      %v456 = vmax.f32 %v423, %v449
      %v457 = vmax.f32 %v424, %v450
      %v458 = vmax.f32 %v425, %v451
      %v459 = vmax.f32 %v426, %v452
      %s460 = scalar_lea.vmem [#allocation2], 2
      %v461 = vld [vmem:[%s460] ss:$2 sm:$0x7f]
      %s462 = scalar_lea.vmem [#allocation2], 34
      %v463 = vld [vmem:[%s462] ss:$2 sm:$0x7f]
      %s464 = scalar_lea.vmem [#allocation2], 66
      %v465 = vld [vmem:[%s464] ss:$2 sm:$0x7f]
      %s466 = scalar_lea.vmem [#allocation2], 98
      %v467 = vld [vmem:[%s466] ss:$2 sm:$0x7f]
      %s468 = scalar_lea.vmem [#allocation2], 130
      %v469 = vld [vmem:[%s468] ss:$2 sm:$0x7f]
      %s470 = scalar_lea.vmem [#allocation2], 162
      %v471 = vld [vmem:[%s470] ss:$2 sm:$0x7f]
      %s472 = scalar_lea.vmem [#allocation2], 194
      %v473 = vld [vmem:[%s472] ss:$2 sm:$0x7f]
      %v474 = vld [vmem:[%s286 + $0x2] sm:$0x1]
      %v475 = vlaneseq
      %v476 = vshrl.u32 %v475, 7
      %v477 = vsub.s32 0, %v476
      %v478 = vrot.slane %v474, %v477
      %v479 = vadd.f32 %v461, %v478
      %v480 = vadd.f32 %v463, %v478
      %v481 = vadd.f32 %v465, %v478
      %v482 = vadd.f32 %v467, %v478
      %v483 = vadd.f32 %v469, %v478
      %v484 = vadd.f32 %v471, %v478
      %v485 = vadd.f32 %v473, %v478
      %v486 = vmax.f32 %v453, %v479
      %v487 = vmax.f32 %v454, %v480
      %v488 = vmax.f32 %v455, %v481
      %v489 = vmax.f32 %v456, %v482
      %v490 = vmax.f32 %v457, %v483
      %v491 = vmax.f32 %v458, %v484
      %v492 = vmax.f32 %v459, %v485
      %s493 = scalar_lea.vmem [#allocation2], 16
      %v494 = vld [vmem:[%s493] ss:$2 sm:$0x7f]
      %s495 = scalar_lea.vmem %s493, 32 [#allocation2]
      %v496 = vld [vmem:[%s495] ss:$2 sm:$0x7f]
      %s497 = scalar_lea.vmem %s493, 64 [#allocation2]
      %v498 = vld [vmem:[%s497] ss:$2 sm:$0x7f]
      %s499 = scalar_lea.vmem %s493, 96 [#allocation2]
      %v500 = vld [vmem:[%s499] ss:$2 sm:$0x7f]
      %s501 = scalar_lea.vmem %s493, 128 [#allocation2]
      %v502 = vld [vmem:[%s501] ss:$2 sm:$0x7f]
      %s503 = scalar_lea.vmem %s493, 160 [#allocation2]
      %v504 = vld [vmem:[%s503] ss:$2 sm:$0x7f]
      %s505 = scalar_lea.vmem %s493, 192 [#allocation2]
      %v506 = vld [vmem:[%s505] ss:$2 sm:$0x7f]
      %v507 = vld [vmem:[%s286 + $0x3] sm:$0x1]
      %v508 = vlaneseq
      %v509 = vshrl.u32 %v508, 7
      %v510 = vsub.s32 0, %v509
      %v511 = vrot.slane %v507, %v510
      %v512 = vadd.f32 %v494, %v511
      %v513 = vadd.f32 %v496, %v511
      %v514 = vadd.f32 %v498, %v511
      %v515 = vadd.f32 %v500, %v511
      %v516 = vadd.f32 %v502, %v511
      %v517 = vadd.f32 %v504, %v511
      %v518 = vadd.f32 %v506, %v511
      %v519 = vmax.f32 %v486, %v512
      %v520 = vmax.f32 %v487, %v513
      %v521 = vmax.f32 %v488, %v514
      %v522 = vmax.f32 %v489, %v515
      %v523 = vmax.f32 %v490, %v516
      %v524 = vmax.f32 %v491, %v517
      %v525 = vmax.f32 %v492, %v518
      %s526 = scalar_lea.vmem %s493, 1 [#allocation2]
      %v527 = vld [vmem:[%s526] ss:$2 sm:$0x7f]
      %s528 = scalar_lea.vmem %s493, 33 [#allocation2]
      %v529 = vld [vmem:[%s528] ss:$2 sm:$0x7f]
      %s530 = scalar_lea.vmem %s493, 65 [#allocation2]
      %v531 = vld [vmem:[%s530] ss:$2 sm:$0x7f]
      %s532 = scalar_lea.vmem %s493, 97 [#allocation2]
      %v533 = vld [vmem:[%s532] ss:$2 sm:$0x7f]
      %s534 = scalar_lea.vmem %s493, 129 [#allocation2]
      %v535 = vld [vmem:[%s534] ss:$2 sm:$0x7f]
      %s536 = scalar_lea.vmem %s493, 161 [#allocation2]
      %v537 = vld [vmem:[%s536] ss:$2 sm:$0x7f]
      %s538 = scalar_lea.vmem %s493, 193 [#allocation2]
      %v539 = vld [vmem:[%s538] ss:$2 sm:$0x7f]
      %v540 = vld [vmem:[%s286 + $0x4] sm:$0x1]
      %v541 = vlaneseq
      %v542 = vshrl.u32 %v541, 7
      %v543 = vsub.s32 0, %v542
      %v544 = vrot.slane %v540, %v543
      %v545 = vadd.f32 %v527, %v544
      %v546 = vadd.f32 %v529, %v544
      %v547 = vadd.f32 %v531, %v544
      %v548 = vadd.f32 %v533, %v544
      %v549 = vadd.f32 %v535, %v544
      %v550 = vadd.f32 %v537, %v544
      %v551 = vadd.f32 %v539, %v544
      %v552 = vmax.f32 %v519, %v545
      %v553 = vmax.f32 %v520, %v546
      %v554 = vmax.f32 %v521, %v547
      %v555 = vmax.f32 %v522, %v548
      %v556 = vmax.f32 %v523, %v549
      %v557 = vmax.f32 %v524, %v550
      %v558 = vmax.f32 %v525, %v551
      %s559 = scalar_lea.vmem %s493, 2 [#allocation2]
      %v560 = vld [vmem:[%s559] ss:$2 sm:$0x7f]
      %s561 = scalar_lea.vmem %s493, 34 [#allocation2]
      %v562 = vld [vmem:[%s561] ss:$2 sm:$0x7f]
      %s563 = scalar_lea.vmem %s493, 66 [#allocation2]
      %v564 = vld [vmem:[%s563] ss:$2 sm:$0x7f]
      %s565 = scalar_lea.vmem %s493, 98 [#allocation2]
      %v566 = vld [vmem:[%s565] ss:$2 sm:$0x7f]
      %s567 = scalar_lea.vmem %s493, 130 [#allocation2]
      %v568 = vld [vmem:[%s567] ss:$2 sm:$0x7f]
      %s569 = scalar_lea.vmem %s493, 162 [#allocation2]
      %v570 = vld [vmem:[%s569] ss:$2 sm:$0x7f]
      %s571 = scalar_lea.vmem %s493, 194 [#allocation2]
      %v572 = vld [vmem:[%s571] ss:$2 sm:$0x7f]
      %v573 = vld [vmem:[%s286 + $0x5] sm:$0x1]
      %v574 = vlaneseq
      %v575 = vshrl.u32 %v574, 7
      %v576 = vsub.s32 0, %v575
      %v577 = vrot.slane %v573, %v576
      %v578 = vadd.f32 %v560, %v577
      %v579 = vadd.f32 %v562, %v577
      %v580 = vadd.f32 %v564, %v577
      %v581 = vadd.f32 %v566, %v577
      %v582 = vadd.f32 %v568, %v577
      %v583 = vadd.f32 %v570, %v577
      %v584 = vadd.f32 %v572, %v577
      %v585 = vmax.f32 %v552, %v578
      %v586 = vmax.f32 %v553, %v579
      %v587 = vmax.f32 %v554, %v580
      %v588 = vmax.f32 %v555, %v581
      %v589 = vmax.f32 %v556, %v582
      %v590 = vmax.f32 %v557, %v583
      %v591 = vmax.f32 %v558, %v584
      %s592 = scalar_lea.vmem [#allocation2], 32
      %v593 = vld [vmem:[%s592] ss:$2 sm:$0x7f]
      %s594 = scalar_lea.vmem %s592, 32 [#allocation2]
      %v595 = vld [vmem:[%s594] ss:$2 sm:$0x7f]
      %s596 = scalar_lea.vmem %s592, 64 [#allocation2]
      %v597 = vld [vmem:[%s596] ss:$2 sm:$0x7f]
      %s598 = scalar_lea.vmem %s592, 96 [#allocation2]
      %v599 = vld [vmem:[%s598] ss:$2 sm:$0x7f]
      %s600 = scalar_lea.vmem %s592, 128 [#allocation2]
      %v601 = vld [vmem:[%s600] ss:$2 sm:$0x7f]
      %s602 = scalar_lea.vmem %s592, 160 [#allocation2]
      %v603 = vld [vmem:[%s602] ss:$2 sm:$0x7f]
      %s604 = scalar_lea.vmem %s592, 192 [#allocation2]
      %v605 = vld [vmem:[%s604] ss:$2 sm:$0x7f]
      %v606 = vld [vmem:[%s286 + $0x6] sm:$0x1]
      %v607 = vlaneseq
      %v608 = vshrl.u32 %v607, 7
      %v609 = vsub.s32 0, %v608
      %v610 = vrot.slane %v606, %v609
      %v611 = vadd.f32 %v593, %v610
      %v612 = vadd.f32 %v595, %v610
      %v613 = vadd.f32 %v597, %v610
      %v614 = vadd.f32 %v599, %v610
      %v615 = vadd.f32 %v601, %v610
      %v616 = vadd.f32 %v603, %v610
      %v617 = vadd.f32 %v605, %v610
      %v618 = vmax.f32 %v585, %v611
      %v619 = vmax.f32 %v586, %v612
      %v620 = vmax.f32 %v587, %v613
      %v621 = vmax.f32 %v588, %v614
      %v622 = vmax.f32 %v589, %v615
      %v623 = vmax.f32 %v590, %v616
      %v624 = vmax.f32 %v591, %v617
      %s625 = scalar_lea.vmem %s592, 1 [#allocation2]
      %v626 = vld [vmem:[%s625] ss:$2 sm:$0x7f]
      %s627 = scalar_lea.vmem %s592, 33 [#allocation2]
      %v628 = vld [vmem:[%s627] ss:$2 sm:$0x7f]
      %s629 = scalar_lea.vmem %s592, 65 [#allocation2]
      %v630 = vld [vmem:[%s629] ss:$2 sm:$0x7f]
      %s631 = scalar_lea.vmem %s592, 97 [#allocation2]
      %v632 = vld [vmem:[%s631] ss:$2 sm:$0x7f]
      %s633 = scalar_lea.vmem %s592, 129 [#allocation2]
      %v634 = vld [vmem:[%s633] ss:$2 sm:$0x7f]
      %s635 = scalar_lea.vmem %s592, 161 [#allocation2]
      %v636 = vld [vmem:[%s635] ss:$2 sm:$0x7f]
      %s637 = scalar_lea.vmem %s592, 193 [#allocation2]
      %v638 = vld [vmem:[%s637] ss:$2 sm:$0x7f]
      %v639 = vld [vmem:[%s286 + $0x7] sm:$0x1]
      %v640 = vlaneseq
      %v641 = vshrl.u32 %v640, 7
      %v642 = vsub.s32 0, %v641
      %v643 = vrot.slane %v639, %v642
      %v644 = vadd.f32 %v626, %v643
      %v645 = vadd.f32 %v628, %v643
      %v646 = vadd.f32 %v630, %v643
      %v647 = vadd.f32 %v632, %v643
      %v648 = vadd.f32 %v634, %v643
      %v649 = vadd.f32 %v636, %v643
      %v650 = vadd.f32 %v638, %v643
      %v651 = vmax.f32 %v618, %v644
      %v652 = vmax.f32 %v619, %v645
      %v653 = vmax.f32 %v620, %v646
      %v654 = vmax.f32 %v621, %v647
      %v655 = vmax.f32 %v622, %v648
      %v656 = vmax.f32 %v623, %v649
      %v657 = vmax.f32 %v624, %v650
      %s658 = scalar_lea.vmem %s592, 2 [#allocation2]
      %v659 = vld [vmem:[%s658] ss:$2 sm:$0x7f]
      %s660 = scalar_lea.vmem %s592, 34 [#allocation2]
      %v661 = vld [vmem:[%s660] ss:$2 sm:$0x7f]
      %s662 = scalar_lea.vmem %s592, 66 [#allocation2]
      %v663 = vld [vmem:[%s662] ss:$2 sm:$0x7f]
      %s664 = scalar_lea.vmem %s592, 98 [#allocation2]
      %v665 = vld [vmem:[%s664] ss:$2 sm:$0x7f]
      %s666 = scalar_lea.vmem %s592, 130 [#allocation2]
      %v667 = vld [vmem:[%s666] ss:$2 sm:$0x7f]
      %s668 = scalar_lea.vmem %s592, 162 [#allocation2]
      %v669 = vld [vmem:[%s668] ss:$2 sm:$0x7f]
      %s670 = scalar_lea.vmem %s592, 194 [#allocation2]
      %v671 = vld [vmem:[%s670] ss:$2 sm:$0x7f]
      %v672 = vld [vmem:[%s286 + $0x8] sm:$0x1]
      %v673 = vlaneseq
      %v674 = vshrl.u32 %v673, 7
      %v675 = vsub.s32 0, %v674
      %v676 = vrot.slane %v672, %v675
      %v677 = vadd.f32 %v659, %v676
      %v678 = vadd.f32 %v661, %v676
      %v679 = vadd.f32 %v663, %v676
      %v680 = vadd.f32 %v665, %v676
      %v681 = vadd.f32 %v667, %v676
      %v682 = vadd.f32 %v669, %v676
      %v683 = vadd.f32 %v671, %v676
      %v684 = vmax.f32 %v651, %v677
      %v685 = vmax.f32 %v652, %v678
      %v686 = vmax.f32 %v653, %v679
      %v687 = vmax.f32 %v654, %v680
      %v688 = vmax.f32 %v655, %v681
      %v689 = vmax.f32 %v656, %v682
      %v690 = vmax.f32 %v657, %v683
      %vm691 = vcmask 30720
      %692 = vst.msk [vmem:[%s338] sm:$0x7f] %vm691, %v684
      %693 = vst.msk [vmem:[%s338 + $0x8] sm:$0x7f] %vm691, %v685
      %694 = vst.msk [vmem:[%s338 + $0x10] sm:$0x7f] %vm691, %v686
      %695 = vst.msk [vmem:[%s338 + $0x18] sm:$0x7f] %vm691, %v687
      %696 = vst.msk [vmem:[%s338 + $0x20] sm:$0x7f] %vm691, %v688
      %697 = vst.msk [vmem:[%s338 + $0x28] sm:$0x7f] %vm691, %v689
      %698 = vst.msk [vmem:[%s338 + $0x30] sm:$0x7f] %vm691, %v690
      %s699 = smul.u32 7, %s21
      %p700 = scmp.lt.s32.totalorder %s19, 1
      %s701 = scalar_select %p700, %s19, 1
      %p702 = scmp.lt.s32.totalorder %s699, 6
      %s703 = scalar_select %p702, %s699, 6
      %p704 = scmp.lt.s32.totalorder %s20, 0
      %s705 = scalar_select %p704, %s20, 0
      %s706 = sadd.s32 %s705, %s703
      %s707 = smul.addr %s701, 7
      %s708 = sadd.s32 %s706, %s707
      %s709 = smul.addr %s708, 8
      %s710 = scalar_lea.vmem %s3, %s709
      // Predicated region
      $region33: #{tpu_custom_call.1} parent=31 // pred_check
        %p711 = pneg %p145
      $region34: #{tpu_custom_call.1} parent=31 // pred_check_branch
        %713 = sbr.rel (%p711) target = $region36
      $region35: #{tpu_custom_call.1} parent=31 // pred_region
        %s714 = smul.u32 7, %s21
      $region36: #{tpu_custom_call.1} parent=31 // pred_fallthru
        _
    $region32: #{tpu_custom_call.1} parent=5 // pred_fallthru
      _
    %p715 = scmp.le.s32.totalorder 2, %s9
    // Predicated region
    $region37: #{tpu_custom_call.1} parent=5 // pred_check
      %p716 = pneg %p715
    $region38: #{tpu_custom_call.1} parent=5 // pred_check_branch
      %718 = sbr.rel (%p716) target = $region40
    $region39: #{tpu_custom_call.1} parent=5 // pred_region
      %s719 = ssub.s32 %s9, 2
      // Predicated region
      $region41: #{tpu_custom_call.1} parent=39 // pred_check
        %p720 = pneg %p151
      $region42: #{tpu_custom_call.1} parent=39 // pred_check_branch
        %722 = sbr.rel (%p720) target = $region44
      $region43: #{tpu_custom_call.1} parent=39 // pred_region
        %s723 = smul.u32 7, %s24
        %p724 = scmp.lt.s32.totalorder %s22, 1
        %s725 = scalar_select %p724, %s22, 1
        %p726 = scmp.lt.s32.totalorder %s723, 6
        %s727 = scalar_select %p726, %s723, 6
        %p728 = scmp.lt.s32.totalorder %s23, 0
        %s729 = scalar_select %p728, %s23, 0
        %s730 = sadd.s32 %s729, %s727
        %s731 = smul.addr %s725, 7
        %s732 = sadd.s32 %s730, %s731
        %s733 = smul.addr %s732, 8
        %s734 = scalar_lea.vmem %s3, %s733
      $region44: #{tpu_custom_call.1} parent=39 // pred_fallthru
        _
    $region40: #{tpu_custom_call.1} parent=5 // pred_fallthru
      _
  $region6: #{tpu_custom_call.1} parent=0 // loop_footer
    %s13 = sadd.s32 1, %s9
  $region7: #{tpu_custom_call.1} parent=0 // loop_footer_branch
    %8 = sbr.rel target = $region3
  $region8: #{tpu_custom_call.1} parent=0 // loop_exit
    _

</llo_original>
